<compile_context>
chip_gen: v7x
topology: tpu7x:2x2x1
jax: 0.10.0
libtpu: 0.0.40
codegen_flags: <defaults>
</compile_context>

<pallas_src>
import jax
import jax.numpy as jnp
from jax.experimental import pallas as pl
from jax.experimental.pallas import tpu as pltpu


def _round_up(n, m):
    return ((n + m - 1) // m) * m


def _csl_kernel(x_ref, ctx_ref, w_ref, wgb_ref, b_ref, bg_ref, out_ref):
    # x_ref  : (TB, dim_in)        input dtype (streamed)
    # ctx_ref: (TB, ctx_dim)       input dtype (streamed)
    # w_ref  : (dim_in, dim_out)   bf16 (resident)
    # wgb_ref: (ctx_dim, 2*d)      bf16 (resident)  -- [Wg | Wb]
    # b_ref  : (1, d) f32, bg_ref: (1, d) f32 (resident)
    # out_ref: (TB, d)             out dtype
    d = out_ref.shape[-1]

    # Main linear: MXU matmul over dim_in, f32 accumulation, f32 bias add.
    lin = jnp.dot(x_ref[...].astype(jnp.bfloat16), w_ref[...],
                  preferred_element_type=jnp.float32) + b_ref[...]

    # Hyper gate + hyper bias share one MXU call over the tiny ctx contraction.
    gh = jnp.dot(ctx_ref[...].astype(jnp.bfloat16), wgb_ref[...],
                 preferred_element_type=jnp.float32)
    gate = jax.nn.sigmoid(gh[:, :d] + bg_ref[...])   # EUP, f32
    hbias = gh[:, d:]

    out_ref[...] = (lin * gate + hbias).astype(out_ref.dtype)


def pack_params(params):
    """One-time param prep: bf16 weights for the MXU, f32 biases for the epilogue."""
    W = params["W"].astype(jnp.bfloat16)                                   # (dim_in, dim_out)
    Wgb = jnp.concatenate([params["Wg"], params["Wb"]], axis=1)            # (ctx, 2*dim_out)
    Wgb = Wgb.astype(jnp.bfloat16)
    b = params["b"].reshape(1, -1).astype(jnp.float32)                     # (1, dim_out)
    bg = params["bg"].reshape(1, -1).astype(jnp.float32)                   # (1, dim_out)
    return W, Wgb, b, bg


def concat_squash_linear(x, context, W, Wgb, b, bg, *, tile_b=1024, out_dtype=None):
    """x: (B, dim_in), context: (B, 1+dim_context). Returns (B, dim_out)."""
    B, dim_in = x.shape
    ctx_dim = context.shape[1]
    dim_out = W.shape[1]
    out_dtype = x.dtype if out_dtype is None else jnp.dtype(out_dtype)

    # Balanced batch tiling: derive #tiles first, then round the tile to 8 rows
    # (pad waste < 8 rows); force >= 2 tiles when possible so v7x's 2 TCs both work.
    n_tiles = max(pl.cdiv(B, tile_b), 2 if B >= 16 else 1)
    tb = _round_up(pl.cdiv(B, n_tiles), 8)
    n_tiles = pl.cdiv(B, tb)
    B_pad = n_tiles * tb
    if B_pad != B:
        x = jnp.pad(x, ((0, B_pad - B), (0, 0)))
        context = jnp.pad(context, ((0, B_pad - B), (0, 0)))

    flops = 2 * B_pad * dim_out * (dim_in + 2 * ctx_dim)
    bytes_accessed = (B_pad * dim_in * x.dtype.itemsize
                      + B_pad * ctx_dim * context.dtype.itemsize
                      + dim_in * dim_out * 2 + ctx_dim * 2 * dim_out * 2
                      + 2 * dim_out * 4
                      + B_pad * dim_out * out_dtype.itemsize)

    out = pl.pallas_call(
        _csl_kernel,
        out_shape=jax.ShapeDtypeStruct((B_pad, dim_out), out_dtype),
        grid_spec=pltpu.PrefetchScalarGridSpec(
            num_scalar_prefetch=0,
            grid=(n_tiles,),
            in_specs=[
                pl.BlockSpec((tb, dim_in), lambda i: (i, 0)),            # x (streamed)
                pl.BlockSpec((tb, ctx_dim), lambda i: (i, 0)),           # context (streamed)
                pl.BlockSpec((dim_in, dim_out), lambda i: (0, 0)),       # W (resident)
                pl.BlockSpec((ctx_dim, 2 * dim_out), lambda i: (0, 0)),  # [Wg|Wb] (resident)
                pl.BlockSpec((1, dim_out), lambda i: (0, 0)),            # b  (resident f32)
                pl.BlockSpec((1, dim_out), lambda i: (0, 0)),            # bg (resident f32)
            ],
            out_specs=pl.BlockSpec((tb, dim_out), lambda i: (i, 0)),
        ),
        compiler_params=pltpu.CompilerParams(
            dimension_semantics=("parallel",),   # megacore / v7x 2-TC sharding
        ),
        cost_estimate=pl.CostEstimate(
            flops=flops,
            transcendentals=B_pad * dim_out,
            bytes_accessed=bytes_accessed,
        ),
    )(x, context, W, Wgb, b, bg)

    if B_pad != B:
        out = out[:B]
    return out


def init_params(key, dim_in, dim_out, dim_context):
    """Deterministic synthetic init (PyTorch Linear-ish uniform), stored as (in, out)."""
    ctx_dim = 1 + dim_context
    k = jax.random.split(key, 5)
    lim_main = 1.0 / jnp.sqrt(dim_in)
    lim_hyp = 1.0 / jnp.sqrt(ctx_dim)
    return {
        "W": jax.random.uniform(k[0], (dim_in, dim_out), jnp.float32, -lim_main, lim_main),
        "b": jax.random.uniform(k[1], (1, dim_out), jnp.float32, -lim_main, lim_main),
        "Wg": jax.random.uniform(k[2], (ctx_dim, dim_out), jnp.float32, -lim_hyp, lim_hyp),
        "bg": jax.random.uniform(k[3], (1, dim_out), jnp.float32, -lim_hyp, lim_hyp),
        "Wb": jax.random.uniform(k[4], (ctx_dim, dim_out), jnp.float32, -lim_hyp, lim_hyp),
    }


def reference(x, context, params):
    lin = x @ params["W"] + params["b"]
    gate = jax.nn.sigmoid(context @ params["Wg"] + params["bg"])
    hbias = context @ params["Wb"]
    return lin * gate + hbias


def _run_case(key, B, dim_in, dim_out, dim_context, tile_b):
    kx, kc, kp = jax.random.split(key, 3)
    x = jax.random.normal(kx, (B, dim_in), jnp.float32)
    context = jax.random.normal(kc, (B, 1 + dim_context), jnp.float32)
    params = init_params(kp, dim_in, dim_out, dim_context)
    W, Wgb, b, bg = pack_params(params)

    out = concat_squash_linear(x, context, W, Wgb, b, bg, tile_b=tile_b)
    out = jax.block_until_ready(out)

    ref = reference(x, context, params)
    assert out.shape == (B, dim_out), out.shape
    max_err = float(jnp.max(jnp.abs(out - ref)))
    # bf16 matmul path -> looser tolerance than the pure-f32 reference.
    assert jnp.allclose(out, ref, atol=2e-2, rtol=2e-2), max_err


if __name__ == "__main__":
    key = jax.random.PRNGKey(0)
    k1, k2 = jax.random.split(key)
    # Small demo shape: single tile, dim_out not a multiple of 128 (unpadded output path).
    _run_case(k1, B=8, dim_in=32, dim_out=64, dim_context=3, tile_b=1024)
    # Multi-tile grid + ragged-batch padding + 128-aligned dim_out path.
    _run_case(k2, B=37, dim_in=256, dim_out=128, dim_context=3, tile_b=16)
    print("KERNEL_OK")
</pallas_src>

<mosaic_0001>
module attributes {stable_mosaic.version = 11 : i64} {
  func.func @_csl_kernel(%arg0: i32, %arg1: memref<8x32xf32, #tpu.memory_space<vmem>>, %arg2: memref<8x4xf32, #tpu.memory_space<vmem>>, %arg3: memref<32x64xbf16, #tpu.memory_space<vmem>>, %arg4: memref<4x128xbf16, #tpu.memory_space<vmem>>, %arg5: memref<1x64xf32, #tpu.memory_space<vmem>>, %arg6: memref<1x64xf32, #tpu.memory_space<vmem>>, %arg7: memref<8x64xf32, #tpu.memory_space<vmem>>) attributes {dimension_semantics = [#tpu.dimension_semantics<parallel>], iteration_bounds = array<i64: 1>, scalar_prefetch = 0 : i64, scratch_operands = 0 : i64, tpu.core_type = #tpu.core_type<tc>, window_params = [{transform_indices = @transform_0, window_bounds = array<i64: 8, 32>}, {transform_indices = @transform_1, window_bounds = array<i64: 8, 4>}, {pipeline_mode = #tpu.pipeline_mode<synchronous>, transform_indices = @transform_2, window_bounds = array<i64: 32, 64>}, {pipeline_mode = #tpu.pipeline_mode<synchronous>, transform_indices = @transform_3, window_bounds = array<i64: 4, 128>}, {pipeline_mode = #tpu.pipeline_mode<synchronous>, transform_indices = @transform_4, window_bounds = array<i64: 1, 64>}, {pipeline_mode = #tpu.pipeline_mode<synchronous>, transform_indices = @transform_5, window_bounds = array<i64: 1, 64>}, {transform_indices = @transform_6, window_bounds = array<i64: 8, 64>}]} {
    %c0 = arith.constant 0 : index
    %c0_0 = arith.constant 0 : index
    %0 = vector.load %arg1[%c0, %c0_0] : memref<8x32xf32, #tpu.memory_space<vmem>>, vector<8x32xf32>
    %1 = arith.truncf %0 : vector<8x32xf32> to vector<8x32xbf16>
    %c0_1 = arith.constant 0 : index
    %c0_2 = arith.constant 0 : index
    %2 = vector.load %arg3[%c0_1, %c0_2] : memref<32x64xbf16, #tpu.memory_space<vmem>>, vector<32x64xbf16>
    %cst = arith.constant dense<0.000000e+00> : vector<8x64xf32>
    %3 = tpu.matmul %1, %2, %cst {dimension_numbers = #tpu.dot_dimension_numbers<[1], [0], [0], [1], [0, 0, 1, 1], [], []>} : vector<8x32xbf16>, vector<32x64xbf16>, vector<8x64xf32> -> vector<8x64xf32>
    %c0_3 = arith.constant 0 : index
    %c0_4 = arith.constant 0 : index
    %4 = vector.load %arg5[%c0_3, %c0_4] : memref<1x64xf32, #tpu.memory_space<vmem>>, vector<1x64xf32>
    %5 = vector.broadcast %4 : vector<1x64xf32> to vector<8x64xf32>
    %6 = arith.addf %3, %5 : vector<8x64xf32>
    %c0_5 = arith.constant 0 : index
    %c0_6 = arith.constant 0 : index
    %7 = vector.load %arg2[%c0_5, %c0_6] : memref<8x4xf32, #tpu.memory_space<vmem>>, vector<8x4xf32>
    %8 = arith.truncf %7 : vector<8x4xf32> to vector<8x4xbf16>
    %c0_7 = arith.constant 0 : index
    %c0_8 = arith.constant 0 : index
    %9 = vector.load %arg4[%c0_7, %c0_8] : memref<4x128xbf16, #tpu.memory_space<vmem>>, vector<4x128xbf16>
    %cst_9 = arith.constant dense<0.000000e+00> : vector<8x128xf32>
    %10 = tpu.matmul %8, %9, %cst_9 {dimension_numbers = #tpu.dot_dimension_numbers<[1], [0], [0], [1], [0, 0, 1, 1], [], []>} : vector<8x4xbf16>, vector<4x128xbf16>, vector<8x128xf32> -> vector<8x128xf32>
    %11 = vector.extract_strided_slice %10 {offsets = [0, 0], sizes = [8, 64], strides = [1, 1]} : vector<8x128xf32> to vector<8x64xf32>
    %c0_10 = arith.constant 0 : index
    %c0_11 = arith.constant 0 : index
    %12 = vector.load %arg6[%c0_10, %c0_11] : memref<1x64xf32, #tpu.memory_space<vmem>>, vector<1x64xf32>
    %13 = vector.broadcast %12 : vector<1x64xf32> to vector<8x64xf32>
    %14 = arith.addf %11, %13 : vector<8x64xf32>
    %15 = arith.negf %14 : vector<8x64xf32>
    %16 = math.exp %15 : vector<8x64xf32>
    %cst_12 = arith.constant 1.000000e+00 : f32
    %17 = vector.broadcast %cst_12 : f32 to vector<8x64xf32>
    %18 = arith.addf %17, %16 : vector<8x64xf32>
    %19 = arith.divf %17, %18 : vector<8x64xf32>
    %20 = vector.extract_strided_slice %10 {offsets = [0, 64], sizes = [8, 64], strides = [1, 1]} : vector<8x128xf32> to vector<8x64xf32>
    %21 = arith.mulf %6, %19 : vector<8x64xf32>
    %22 = arith.addf %21, %20 : vector<8x64xf32>
    %c0_13 = arith.constant 0 : index
    %c0_14 = arith.constant 0 : index
    %23 = vector.load %arg7[%c0_13, %c0_14] : memref<8x64xf32, #tpu.memory_space<vmem>>, vector<8x64xf32>
    tpu.vector_store %arg7[%c0_13, %c0_14], %22 {strides = array<i32>} : memref<8x64xf32, #tpu.memory_space<vmem>>, vector<8x64xf32>,
    return
  }
  func.func @transform_0(%arg0: i32) -> (i32, i32) {
    %c0_i32 = arith.constant 0 : i32
    %c0_i32_0 = arith.constant 0 : i32
    return %arg0, %c0_i32 : i32, i32
  }
  func.func @transform_1(%arg0: i32) -> (i32, i32) {
    %c0_i32 = arith.constant 0 : i32
    %c0_i32_0 = arith.constant 0 : i32
    return %arg0, %c0_i32 : i32, i32
  }
  func.func @transform_2(%arg0: i32) -> (i32, i32) {
    %c0_i32 = arith.constant 0 : i32
    %c0_i32_0 = arith.constant 0 : i32
    %c0_i32_1 = arith.constant 0 : i32
    return %c0_i32, %c0_i32_0 : i32, i32
  }
  func.func @transform_3(%arg0: i32) -> (i32, i32) {
    %c0_i32 = arith.constant 0 : i32
    %c0_i32_0 = arith.constant 0 : i32
    %c0_i32_1 = arith.constant 0 : i32
    return %c0_i32, %c0_i32_0 : i32, i32
  }
  func.func @transform_4(%arg0: i32) -> (i32, i32) {
    %c0_i32 = arith.constant 0 : i32
    %c0_i32_0 = arith.constant 0 : i32
    %c0_i32_1 = arith.constant 0 : i32
    return %c0_i32, %c0_i32_0 : i32, i32
  }
  func.func @transform_5(%arg0: i32) -> (i32, i32) {
    %c0_i32 = arith.constant 0 : i32
    %c0_i32_0 = arith.constant 0 : i32
    %c0_i32_1 = arith.constant 0 : i32
    return %c0_i32, %c0_i32_0 : i32, i32
  }
  func.func @transform_6(%arg0: i32) -> (i32, i32) {
    %c0_i32 = arith.constant 0 : i32
    %c0_i32_0 = arith.constant 0 : i32
    return %arg0, %c0_i32 : i32, i32
  }
}

</mosaic_0001>

<llo_original>
// kernel: tpu_custom_call.1
$region0: #{tpu_custom_call.1}
  #allocation0 [shape = 'u32[]', space=smem, size = 0x4, offset = 0x4, fixed_abs, tag = 'smem constant byte address 0x4 - core index']
  #allocation1 [shape = 'u32[144,128]{1,0:T(1,128)}', space=vmem, size = 0x12000, scoped, tag = 'internal scratch']
  %s0 = inlined_call_operand.hbm [shape: f32[8,32], index: 0, kind: input, shape index: {}]
  %s1 = inlined_call_operand.vmem [shape: f32[8,4], index: 1, kind: input, shape index: {}]
  %s2 = inlined_call_operand.vmem [shape: bf16[32,64], index: 2, kind: input, shape index: {}]
  %s3 = inlined_call_operand.vmem [shape: bf16[4,128], index: 3, kind: input, shape index: {}]
  %s4 = inlined_call_operand.vmem [shape: f32[1,64], index: 4, kind: input, shape index: {}]
  %s5 = inlined_call_operand.vmem [shape: f32[1,64], index: 5, kind: input, shape index: {}]
  %s6 = inlined_call_operand.hbm [shape: f32[8,64], index: 6, kind: output, shape index: {}]
  %s7 = sld [smem:[#allocation0]]
  $region38: #{tpu_custom_call.1} parent=0
    _
  %s9 = ssub.s32 1, %s7
  %s10 = scalar_select 0, %s9, %s7
  $region1: #{tpu_custom_call.1} parent=0
    #allocation2 [shape = 'u8[4096]{0}', space=vmem, size = 0x1000, scoped, tag = 'input window, operand 0, single buffered']
    #allocation3 [shape = 's32[1]{0}', space=sflag, size = 0x4, scoped, tag = 'scoped memory for tpu_custom_call.1']
    #allocation4 [shape = 's32[1]{0}', space=sflag, size = 0x4, scoped, tag = 'scoped memory for tpu_custom_call.1']
    #allocation5 [shape = 'u8[4096]{0}', space=vmem, size = 0x1000, scoped, tag = 'output window, operand 0, single buffered']
    %11 = vsyncpa [#allocation3], 0
    %12 = vsyncpa [#allocation4], 0
    // Predicated region
    $region2: #{tpu_custom_call.1} parent=1 // pred_check
      _
    $region3: #{tpu_custom_call.1} parent=1 // pred_check_branch
      %14 = sbr.rel (0) target = $region5
    $region4: #{tpu_custom_call.1} parent=1 // pred_region
      %s16 = ssub.s32 128, 128
      %17 = vsyncadd [#allocation3], %s16
      %s19 = sshll.u32 [#allocation2], 4
      %s20 = int_to_ptr.vmem [resolvable:$true] %s19
      %22 = dma.hbm_to_vmem [thread:$0]  %s0, 128, %s20, [#allocation3]
    $region5: #{tpu_custom_call.1} parent=1 // pred_fallthru
      _
    // Predicated region
    $region6: #{tpu_custom_call.1} parent=1 // pred_check
      _
    $region7: #{tpu_custom_call.1} parent=1 // pred_check_branch
      %24 = sbr.rel (0) target = $region9
    $region8: #{tpu_custom_call.1} parent=1 // pred_region
      _
    $region9: #{tpu_custom_call.1} parent=1 // pred_fallthru
      _
    // Predicated region
    $region10: #{tpu_custom_call.1} parent=1 // pred_check
      _
    $region11: #{tpu_custom_call.1} parent=1 // pred_check_branch
      %26 = sbr.rel (0) target = $region13
    $region12: #{tpu_custom_call.1} parent=1 // pred_region
      _
    $region13: #{tpu_custom_call.1} parent=1 // pred_fallthru
      _
    // Predicated region
    $region14: #{tpu_custom_call.1} parent=1 // pred_check
      _
    $region15: #{tpu_custom_call.1} parent=1 // pred_check_branch
      %28 = sbr.rel (0) target = $region17
    $region16: #{tpu_custom_call.1} parent=1 // pred_region
      _
    $region17: #{tpu_custom_call.1} parent=1 // pred_fallthru
      _
    // Predicated region
    $region18: #{tpu_custom_call.1} parent=1 // pred_check
      _
    $region19: #{tpu_custom_call.1} parent=1 // pred_check_branch
      %30 = sbr.rel (0) target = $region21
    $region20: #{tpu_custom_call.1} parent=1 // pred_region
      _
    $region21: #{tpu_custom_call.1} parent=1 // pred_fallthru
      _
    // Predicated region
    $region22: #{tpu_custom_call.1} parent=1 // pred_check
      _
    $region23: #{tpu_custom_call.1} parent=1 // pred_check_branch
      %32 = sbr.rel (0) target = $region25
    $region24: #{tpu_custom_call.1} parent=1 // pred_region
      _
    $region25: #{tpu_custom_call.1} parent=1 // pred_fallthru
      _
    // Predicated region
    $region26: #{tpu_custom_call.1} parent=1 // pred_check
      _
    $region27: #{tpu_custom_call.1} parent=1 // pred_check_branch
      %34 = sbr.rel (0) target = $region29
    $region28: #{tpu_custom_call.1} parent=1 // pred_region
      %35 = dma.done [#allocation3], 128
    $region29: #{tpu_custom_call.1} parent=1 // pred_fallthru
      _
    %v37 = vld [vmem:[#allocation2] sm:$0xff]
    %v38 = vpack.c.bf16 %v37, %v37
    %v39 = vld [vmem:[%s2] sm:$0xf]
    %v40 = vld [vmem:[%s2 + $0x4] sm:$0xf]
    %v41 = vld [vmem:[%s2 + $0x8] sm:$0xf]
    %v42 = vld [vmem:[%s2 + $0xc] sm:$0xf]
    %v43 = vld [vmem:[%s4] sm:$0x1]
    %v45 = vlaneseq
    %v46 = vshrl.u32 %v45, 7
    %v47 = vsub.s32 0, %v46
    %v48 = vrot.slane %v43, %v47
    %v54 = vunpack.c.l.b16 %v39
    %v55 = vunpack.c.l.b16 %v40
    %v56 = vunpack.c.l.b16 %v41
    %v57 = vunpack.c.l.b16 %v42
    %v58 = vpack.c.b16 %v55, %v54
    %v59 = vpack.c.b16 %v57, %v56
    %vm62 = vcmask 261120
    %v64 = vsel %vm62, %v38, 0
    %66 = vmatprep.subr.bf16.mxu0 0
    %67 = vmatpush1.bf16.msra.mxu0 %v58
    %68 = vmatprep.subr.bf16.mxu0 0
    %69 = vmatpush1.bf16.msra.mxu0 %v59
    %70 = vmatprep.subr.bf16.mxu0 0
    %71 = vmatpush1.bf16.msra.mxu0 0
    %72 = vmatprep.subr.bf16.mxu0 0
    %73 = vmatpush1.bf16.msra.mxu0 0
    %74 = vmatprep.subr.bf16.mxu0 0
    %75 = vmatpush1.bf16.msra.mxu0 0
    %76 = vmatprep.subr.bf16.mxu0 0
    %77 = vmatpush1.bf16.msra.mxu0 0
    %78 = vmatprep.subr.bf16.mxu0 0
    %79 = vmatpush1.bf16.msra.mxu0 0
    %80 = vmatprep.subr.bf16.mxu0 0
    %81 = vmatpush1.bf16.msra.mxu0 0
    %82 = vmatprep.subr.bf16.mxu0 0
    %83 = vmatpush1.bf16.msra.mxu0 0
    %84 = vmatprep.subr.bf16.mxu0 0
    %85 = vmatpush1.bf16.msra.mxu0 0
    %86 = vmatprep.subr.bf16.mxu0 0
    %87 = vmatpush1.bf16.msra.mxu0 0
    %88 = vmatprep.subr.bf16.mxu0 0
    %89 = vmatpush1.bf16.msra.mxu0 0
    %90 = vmatprep.subr.bf16.mxu0 0
    %91 = vmatpush1.bf16.msra.mxu0 0
    %92 = vmatprep.subr.bf16.mxu0 0
    %93 = vmatpush1.bf16.msra.mxu0 0
    %94 = vmatprep.subr.bf16.mxu0 0
    %95 = vmatpush1.bf16.msra.mxu0 0
    %96 = vmatprep.subr.bf16.mxu0 0
    %97 = vmatpush1.bf16.msra.mxu0 0
    %98 = vmatprep.mubr.bf16.mxu0 0
    %99 = vmatmul.mubr.bf16.gmra.mrb[0].mxu0 %v64
    %v100 = vpop.f32.mrb[0].mxu0
    %v101 = vadd.f32 %v48, %v100
    %v102 = vpop.f32.mrb[0].mxu0
    %v103 = vpop.f32.mrb[0].mxu0
    %v104 = vpop.f32.mrb[0].mxu0
    %105 = vdwg.mxu0
    %v106 = vld [vmem:[%s1] sm:$0xff]
    %v107 = vpack.c.bf16 %v106, %v106
    %v108 = vld [vmem:[%s3] sm:$0x3]
    %vm109 = vcmask 31744
    %v111 = vsel %vm109, %v107, 0
    %vm113 = vcmask 1041408
    %v115 = vsel %vm113, %v108, 0
    %117 = vmatprep.subr.bf16.mxu0 0
    %118 = vmatpush1.bf16.msra.mxu0 %v115
    %119 = vmatprep.subr.bf16.mxu0 0
    %120 = vmatpush1.bf16.msra.mxu0 0
    %121 = vmatprep.subr.bf16.mxu0 0
    %122 = vmatpush1.bf16.msra.mxu0 0
    %123 = vmatprep.subr.bf16.mxu0 0
    %124 = vmatpush1.bf16.msra.mxu0 0
    %125 = vmatprep.subr.bf16.mxu0 0
    %126 = vmatpush1.bf16.msra.mxu0 0
    %127 = vmatprep.subr.bf16.mxu0 0
    %128 = vmatpush1.bf16.msra.mxu0 0
    %129 = vmatprep.subr.bf16.mxu0 0
    %130 = vmatpush1.bf16.msra.mxu0 0
    %131 = vmatprep.subr.bf16.mxu0 0
    %132 = vmatpush1.bf16.msra.mxu0 0
    %133 = vmatprep.subr.bf16.mxu0 0
    %134 = vmatpush1.bf16.msra.mxu0 0
    %135 = vmatprep.subr.bf16.mxu0 0
    %136 = vmatpush1.bf16.msra.mxu0 0
    %137 = vmatprep.subr.bf16.mxu0 0
    %138 = vmatpush1.bf16.msra.mxu0 0
    %139 = vmatprep.subr.bf16.mxu0 0
    %140 = vmatpush1.bf16.msra.mxu0 0
    %141 = vmatprep.subr.bf16.mxu0 0
    %142 = vmatpush1.bf16.msra.mxu0 0
    %143 = vmatprep.subr.bf16.mxu0 0
    %144 = vmatpush1.bf16.msra.mxu0 0
    %145 = vmatprep.subr.bf16.mxu0 0
    %146 = vmatpush1.bf16.msra.mxu0 0
    %147 = vmatprep.subr.bf16.mxu0 0
    %148 = vmatpush1.bf16.msra.mxu0 0
    %149 = vmatprep.mubr.bf16.mxu0 0
    %150 = vmatmul.mubr.bf16.gmra.mrb[0].mxu0 %v111
    %v151 = vpop.f32.mrb[0].mxu0
    %v152 = vadd.f32 0.0, %v151
    %v153 = vpop.f32.mrb[0].mxu0
    %v154 = vpop.f32.mrb[0].mxu0
    %v155 = vpop.f32.mrb[0].mxu0
    %156 = vdwg.mxu0
    %v157 = vld [vmem:[%s5] sm:$0x1]
    %v159 = vlaneseq
    %v160 = vshrl.u32 %v159, 7
    %v161 = vsub.s32 0, %v160
    %v162 = vrot.slane %v157, %v161
    %v164 = vadd.f32 %v152, %v162
    %v165 = vxor.u32 %v164, 2147483648
    %v166 = vmul.f32 %v165, 1.442695
    %v167 = vpow.pop %v166
    %v168 = vadd.f32 %v167, 1.0
    %v169 = vrcp.pop %v168
    %v170 = vmul.f32 1.0, %v169
    %v171 = vmul.f32 %v101, %v170
    %173 = vrot.lane.b32.xlu0 %v152, 64
    %v174 = vpop.permute.xlu0 %173
    %v176 = vadd.f32 %v171, %v174
    %vm177 = vcmask 523264
    %178 = vst.msk [vmem:[#allocation5] sm:$0xff] %vm177, %v176
    // Predicated region
    $region30: #{tpu_custom_call.1} parent=1 // pred_check
      _
    $region31: #{tpu_custom_call.1} parent=1 // pred_check_branch
      %180 = sbr.rel (0) target = $region33
    $region32: #{tpu_custom_call.1} parent=1 // pred_region
      %s182 = ssub.s32 128, 128
      %183 = vsyncadd [#allocation4], %s182
      %s185 = sshll.u32 [#allocation5], 4
      %s186 = int_to_ptr.vmem [resolvable:$true] %s185
      %188 = dma.vmem_to_hbm [thread:$0]  %s186, 128, %s6, [#allocation4]
    $region33: #{tpu_custom_call.1} parent=1 // pred_fallthru
      _
    // Predicated region
    $region34: #{tpu_custom_call.1} parent=1 // pred_check
      _
    $region35: #{tpu_custom_call.1} parent=1 // pred_check_branch
      %190 = sbr.rel (0) target = $region37
    $region36: #{tpu_custom_call.1} parent=1 // pred_region
      %191 = dma.done [#allocation4], 128
    $region37: #{tpu_custom_call.1} parent=1 // pred_fallthru
      _
    %192 = vsyncpa [#allocation3], 1
    %193 = vsyncpa [#allocation4], 1

</llo_original>
